<compile_context>
chip_gen: v7x
topology: tpu7x:2x2x1
jax: 0.10.0
libtpu: 0.0.40
codegen_flags: <defaults>
</compile_context>

<pallas_src>
import jax
import jax.numpy as jnp
import numpy as np
from jax.experimental import pallas as pl
from jax.experimental.pallas import tpu as pltpu

HIDDEN = 256

# Largest batch tile.  2048 rows keeps each f32 [block_b, 256] intermediate at
# 2 MiB (plus bf16 copies + double-buffered x + resident weights), well inside
# the default scoped VMEM on every generation (16 MiB v5e, 32 MiB v6e/v7x) --
# sized against v7x's 64 MiB physical / 32 MiB scoped, not v5e/v6e's 128 MiB.
_MAX_BLOCK_B = 2048


def residual_kernel(x_ref, w1_ref, b1_ref, w2_ref, b2_ref,
                    w3_ref, b3_ref, wv_ref, bv_ref, o_ref):
    cdt = w1_ref.dtype  # MXU input dtype (bfloat16 by default, float32 for parity)

    # x arrives in f32 (tiny: F=32 lanes); cast to the compute dtype in-kernel
    # so the wrapper never launches a separate per-call cast op.
    x = x_ref[...].astype(cdt)

    # fc1: MXU matmul with f32 accumulation; bias add + ReLU in f32 on the VPU
    # (v5e has no bf16 VPU path, so keep elementwise math in f32).
    # NOTE: K = F = 32 pads to the MXU's native K, so fc1 costs nearly the same
    # MXU pushes as fc2/fc3 despite ~1/8 the FLOPs -- shape-inherent, not tiled.
    h = jnp.dot(x, w1_ref[...], preferred_element_type=jnp.float32)
    h = jnp.maximum(h + b1_ref[...], 0.0)

    # fc2
    h = jnp.dot(h.astype(cdt), w2_ref[...], preferred_element_type=jnp.float32)
    h = jnp.maximum(h + b2_ref[...], 0.0)

    # fc3
    h = jnp.dot(h.astype(cdt), w3_ref[...], preferred_element_type=jnp.float32)
    h = jnp.maximum(h + b3_ref[...], 0.0)

    # v_out (H -> 1): a matmul with a single output lane wastes a full MXU
    # push/drain, so use a VPU multiply + XLU lane reduction instead.
    v = jnp.sum(h * wv_ref[...], axis=-1, keepdims=True)
    o_ref[...] = v + bv_ref[...]


def _choose_block_b(batch):
    """Pick the batch tile size.

    * batch < 256: single grid step (latency-bound; nothing to pipeline, and
      megacore sharding would not pay for the extra step overhead).
    * batch >= 256: at least 2 grid steps (so v7x can shard the 'parallel'
      batch axis across both TensorCores), tile capped at _MAX_BLOCK_B rows,
      rounded up to a multiple of 8.  The wrapper pads the batch up to a
      multiple of the block, so no divisibility constraints on B.
    """
    if batch < 256:
        return batch
    block = min(_MAX_BLOCK_B, -(-batch // 2))   # ceil(batch/2), >= 2 steps
    return -(-block // 8) * 8                   # round up to multiple of 8


def prepare_params(params, compute_dtype=jnp.bfloat16):
    """One-time cast of the parameter pytree to the kernel's layout/dtypes.

    Matmul weights go to `compute_dtype` (bfloat16 default -> full-rate MXU,
    half the resident-weight VMEM/DMA); biases and the value head stay f32
    (accumulation / epilogue are always f32).  Call this once at init, NOT per
    forward -- per-call casts cost as much as the kernel itself.
    """
    cdt = jnp.dtype(compute_dtype)
    f32 = jnp.float32
    return dict(
        w1=params["w1"].astype(cdt), b1=params["b1"].astype(f32),
        w2=params["w2"].astype(cdt), b2=params["b2"].astype(f32),
        w3=params["w3"].astype(cdt), b3=params["b3"].astype(f32),
        wv=params["wv"].astype(f32), bv=params["bv"].astype(f32),
    )


def residual_forward(x, params, *, block_b=None):
    """x: [B, F]. params: (ideally pre-`prepare_params`-ed) dict. Returns [B,1] f32.

    The MXU compute dtype is whatever dtype the weight arrays carry (bfloat16
    recommended; float32 for exact parity).  No per-call parameter casts.
    """
    B, F = x.shape
    x = x.astype(jnp.float32)

    if block_b is None:
        block_b = _choose_block_b(B)
    assert block_b == B or block_b % 8 == 0, "block_b must be a multiple of 8"

    # Pad the batch to a multiple of the block (zero rows are sliced off below)
    # instead of ever falling back to a single full-batch block.
    num_blocks = -(-B // block_b)
    b_pad = num_blocks * block_b
    if b_pad != B:
        x = jnp.pad(x, ((0, b_pad - B), (0, 0)))

    w1, b1 = params["w1"], params["b1"]
    w2, b2 = params["w2"], params["b2"]
    w3, b3 = params["w3"], params["b3"]
    wv, bv = params["wv"], params["bv"]

    # Grid-constant operands: same block for every grid step -> DMA'd once and
    # kept resident in VMEM for the whole call.
    resident = lambda a: pl.BlockSpec(a.shape, lambda i: (0, 0))

    out = pl.pallas_call(
        residual_kernel,
        out_shape=jax.ShapeDtypeStruct((b_pad, 1), jnp.float32),
        grid_spec=pltpu.PrefetchScalarGridSpec(
            num_scalar_prefetch=0,
            grid=(num_blocks,),
            in_specs=[
                pl.BlockSpec((block_b, F), lambda i: (i, 0)),  # x tile (pipelined)
                resident(w1), resident(b1),
                resident(w2), resident(b2),
                resident(w3), resident(b3),
                resident(wv), resident(bv),
            ],
            out_specs=pl.BlockSpec((block_b, 1), lambda i: (i, 0)),
        ),
        compiler_params=pltpu.CompilerParams(
            dimension_semantics=("parallel",)),  # batch axis shards across TCs (v7x)
    )(x, w1, b1, w2, b2, w3, b3, wv, bv)

    if b_pad != B:
        out = out[:B]
    return out


def init_params(key, num_features):
    """Deterministic init mimicking nn.Linear defaults (uniform +-1/sqrt(fan_in)).
    v_out weight/bias are zero, exactly as in the PyTorch module's __init__.
    Weights are stored [in, out] (transposed vs PyTorch) for x @ W."""
    ks = jax.random.split(key, 6)

    def linear(kw, kb, fan_in, fan_out):
        bound = fan_in ** -0.5
        w = jax.random.uniform(kw, (fan_in, fan_out), jnp.float32, -bound, bound)
        b = jax.random.uniform(kb, (1, fan_out), jnp.float32, -bound, bound)
        return w, b

    w1, b1 = linear(ks[0], ks[1], num_features, HIDDEN)
    w2, b2 = linear(ks[2], ks[3], HIDDEN, HIDDEN)
    w3, b3 = linear(ks[4], ks[5], HIDDEN, HIDDEN)
    wv = jnp.zeros((1, HIDDEN), jnp.float32)  # v_out.weight.data = zeros([1, 256])
    bv = jnp.zeros((1, 1), jnp.float32)       # v_out.bias.data   = zeros([1])
    return dict(w1=w1, b1=b1, w2=w2, b2=b2, w3=w3, b3=b3, wv=wv, bv=bv)


def make_test_params(key, num_features):
    """Like init_params but with a non-zero value head so allclose is meaningful."""
    p = dict(init_params(key, num_features))
    kv, kb = jax.random.split(jax.random.fold_in(key, 123))
    p["wv"] = jax.random.uniform(kv, (1, HIDDEN), jnp.float32, -0.1, 0.1)
    p["bv"] = jax.random.uniform(kb, (1, 1), jnp.float32, -0.5, 0.5)
    return p


def reference_forward_np(x, p):
    """float64 numpy ground truth (independent of TPU matmul precision)."""
    pp = {k: np.asarray(v, np.float64) for k, v in p.items()}
    h = np.maximum(np.asarray(x, np.float64) @ pp["w1"] + pp["b1"], 0.0)
    h = np.maximum(h @ pp["w2"] + pp["b2"], 0.0)
    h = np.maximum(h @ pp["w3"] + pp["b3"], 0.0)
    return h @ pp["wv"].T + pp["bv"]


if __name__ == "__main__":
    key = jax.random.PRNGKey(0)
    k_param, k_x1, k_x2 = jax.random.split(key, 3)

    num_features = 32

    # 1) Exact PyTorch __init__ (zero value head), bf16 default path:
    #    output must be identically 0 regardless of matmul rounding.
    p0 = init_params(k_param, num_features)
    p0_bf16 = prepare_params(p0)                     # one-time cast, bf16 default
    x_small = jax.random.normal(k_x1, (8, num_features), jnp.float32)
    out0 = jax.block_until_ready(residual_forward(x_small, p0_bf16))
    assert out0.shape == (8, 1)
    assert np.all(np.asarray(out0) == 0.0), "zero-init value head must give 0"

    # 2) Non-zero value head, small batch.
    p = make_test_params(k_param, num_features)
    p_f32 = prepare_params(p, compute_dtype=jnp.float32)   # parity path
    p_bf16 = prepare_params(p)                              # production path

    out_f32_s = jax.block_until_ready(residual_forward(x_small, p_f32))
    np.testing.assert_allclose(np.asarray(out_f32_s),
                               reference_forward_np(x_small, p),
                               atol=1e-2, rtol=1e-2)
    out_bf16_s = jax.block_until_ready(residual_forward(x_small, p_bf16))
    np.testing.assert_allclose(np.asarray(out_bf16_s),
                               reference_forward_np(x_small, p),
                               atol=5e-2, rtol=5e-2)

    # 3) Medium batch with an awkward size (600): exercises the pad-to-block
    #    path and >= 2 grid steps (pipelined, v7x megacore-shardable).
    B = 600
    x_big = jax.random.normal(k_x2, (B, num_features), jnp.float32)
    ref_b = reference_forward_np(x_big, p)

    out_f32_b = jax.block_until_ready(residual_forward(x_big, p_f32))
    assert out_f32_b.shape == (B, 1)
    np.testing.assert_allclose(np.asarray(out_f32_b), ref_b, atol=1e-2, rtol=1e-2)

    out_bf16_b = jax.block_until_ready(residual_forward(x_big, p_bf16))
    assert out_bf16_b.shape == (B, 1)
    np.testing.assert_allclose(np.asarray(out_bf16_b), ref_b, atol=5e-2, rtol=5e-2)

    print("KERNEL_OK")
</pallas_src>

<mosaic_0001>
module attributes {stable_mosaic.version = 11 : i64} {
  func.func @residual_kernel(%arg0: i32, %arg1: memref<8x32xf32, #tpu.memory_space<vmem>>, %arg2: memref<32x256xbf16, #tpu.memory_space<vmem>>, %arg3: memref<1x256xf32, #tpu.memory_space<vmem>>, %arg4: memref<256x256xbf16, #tpu.memory_space<vmem>>, %arg5: memref<1x256xf32, #tpu.memory_space<vmem>>, %arg6: memref<256x256xbf16, #tpu.memory_space<vmem>>, %arg7: memref<1x256xf32, #tpu.memory_space<vmem>>, %arg8: memref<1x256xf32, #tpu.memory_space<vmem>>, %arg9: memref<1x1xf32, #tpu.memory_space<vmem>>, %arg10: memref<8x1xf32, #tpu.memory_space<vmem>>) attributes {dimension_semantics = [#tpu.dimension_semantics<parallel>], iteration_bounds = array<i64: 1>, scalar_prefetch = 0 : i64, scratch_operands = 0 : i64, tpu.core_type = #tpu.core_type<tc>, window_params = [{transform_indices = @transform_0, window_bounds = array<i64: 8, 32>}, {pipeline_mode = #tpu.pipeline_mode<synchronous>, transform_indices = @transform_1, window_bounds = array<i64: 32, 256>}, {pipeline_mode = #tpu.pipeline_mode<synchronous>, transform_indices = @transform_2, window_bounds = array<i64: 1, 256>}, {pipeline_mode = #tpu.pipeline_mode<synchronous>, transform_indices = @transform_3, window_bounds = array<i64: 256, 256>}, {pipeline_mode = #tpu.pipeline_mode<synchronous>, transform_indices = @transform_4, window_bounds = array<i64: 1, 256>}, {pipeline_mode = #tpu.pipeline_mode<synchronous>, transform_indices = @transform_5, window_bounds = array<i64: 256, 256>}, {pipeline_mode = #tpu.pipeline_mode<synchronous>, transform_indices = @transform_6, window_bounds = array<i64: 1, 256>}, {pipeline_mode = #tpu.pipeline_mode<synchronous>, transform_indices = @transform_7, window_bounds = array<i64: 1, 256>}, {pipeline_mode = #tpu.pipeline_mode<synchronous>, transform_indices = @transform_8, window_bounds = array<i64: 1, 1>}, {transform_indices = @transform_9, window_bounds = array<i64: 8, 1>}]} {
    %c0 = arith.constant 0 : index
    %c0_0 = arith.constant 0 : index
    %0 = vector.load %arg1[%c0, %c0_0] : memref<8x32xf32, #tpu.memory_space<vmem>>, vector<8x32xf32>
    %1 = arith.truncf %0 : vector<8x32xf32> to vector<8x32xbf16>
    %c0_1 = arith.constant 0 : index
    %c0_2 = arith.constant 0 : index
    %2 = vector.load %arg2[%c0_1, %c0_2] : memref<32x256xbf16, #tpu.memory_space<vmem>>, vector<32x256xbf16>
    %cst = arith.constant dense<0.000000e+00> : vector<8x256xf32>
    %3 = tpu.matmul %1, %2, %cst {dimension_numbers = #tpu.dot_dimension_numbers<[1], [0], [0], [1], [0, 0, 1, 1], [], []>} : vector<8x32xbf16>, vector<32x256xbf16>, vector<8x256xf32> -> vector<8x256xf32>
    %c0_3 = arith.constant 0 : index
    %c0_4 = arith.constant 0 : index
    %4 = vector.load %arg3[%c0_3, %c0_4] : memref<1x256xf32, #tpu.memory_space<vmem>>, vector<1x256xf32>
    %5 = vector.broadcast %4 : vector<1x256xf32> to vector<8x256xf32>
    %6 = arith.addf %3, %5 : vector<8x256xf32>
    %cst_5 = arith.constant 0.000000e+00 : f32
    %7 = vector.broadcast %cst_5 : f32 to vector<8x256xf32>
    %8 = arith.maximumf %6, %7 : vector<8x256xf32>
    %9 = arith.truncf %8 : vector<8x256xf32> to vector<8x256xbf16>
    %c0_6 = arith.constant 0 : index
    %c0_7 = arith.constant 0 : index
    %10 = vector.load %arg4[%c0_6, %c0_7] : memref<256x256xbf16, #tpu.memory_space<vmem>>, vector<256x256xbf16>
    %cst_8 = arith.constant dense<0.000000e+00> : vector<8x256xf32>
    %11 = tpu.matmul %9, %10, %cst_8 {dimension_numbers = #tpu.dot_dimension_numbers<[1], [0], [0], [1], [0, 0, 1, 1], [], []>} : vector<8x256xbf16>, vector<256x256xbf16>, vector<8x256xf32> -> vector<8x256xf32>
    %c0_9 = arith.constant 0 : index
    %c0_10 = arith.constant 0 : index
    %12 = vector.load %arg5[%c0_9, %c0_10] : memref<1x256xf32, #tpu.memory_space<vmem>>, vector<1x256xf32>
    %13 = vector.broadcast %12 : vector<1x256xf32> to vector<8x256xf32>
    %14 = arith.addf %11, %13 : vector<8x256xf32>
    %cst_11 = arith.constant 0.000000e+00 : f32
    %15 = vector.broadcast %cst_11 : f32 to vector<8x256xf32>
    %16 = arith.maximumf %14, %15 : vector<8x256xf32>
    %17 = arith.truncf %16 : vector<8x256xf32> to vector<8x256xbf16>
    %c0_12 = arith.constant 0 : index
    %c0_13 = arith.constant 0 : index
    %18 = vector.load %arg6[%c0_12, %c0_13] : memref<256x256xbf16, #tpu.memory_space<vmem>>, vector<256x256xbf16>
    %cst_14 = arith.constant dense<0.000000e+00> : vector<8x256xf32>
    %19 = tpu.matmul %17, %18, %cst_14 {dimension_numbers = #tpu.dot_dimension_numbers<[1], [0], [0], [1], [0, 0, 1, 1], [], []>} : vector<8x256xbf16>, vector<256x256xbf16>, vector<8x256xf32> -> vector<8x256xf32>
    %c0_15 = arith.constant 0 : index
    %c0_16 = arith.constant 0 : index
    %20 = vector.load %arg7[%c0_15, %c0_16] : memref<1x256xf32, #tpu.memory_space<vmem>>, vector<1x256xf32>
    %21 = vector.broadcast %20 : vector<1x256xf32> to vector<8x256xf32>
    %22 = arith.addf %19, %21 : vector<8x256xf32>
    %cst_17 = arith.constant 0.000000e+00 : f32
    %23 = vector.broadcast %cst_17 : f32 to vector<8x256xf32>
    %24 = arith.maximumf %22, %23 : vector<8x256xf32>
    %c0_18 = arith.constant 0 : index
    %c0_19 = arith.constant 0 : index
    %25 = vector.load %arg8[%c0_18, %c0_19] : memref<1x256xf32, #tpu.memory_space<vmem>>, vector<1x256xf32>
    %26 = vector.broadcast %25 : vector<1x256xf32> to vector<8x256xf32>
    %27 = arith.mulf %24, %26 : vector<8x256xf32>
    %cst_20 = arith.constant dense<0.000000e+00> : vector<8xf32>
    %28 = vector.multi_reduction <add>, %27, %cst_20 [1] : vector<8x256xf32> to vector<8xf32>
    %29 = vector.shape_cast %28 : vector<8xf32> to vector<8x1xf32>
    %c0_21 = arith.constant 0 : index
    %c0_22 = arith.constant 0 : index
    %30 = vector.load %arg9[%c0_21, %c0_22] : memref<1x1xf32, #tpu.memory_space<vmem>>, vector<1x1xf32>
    %31 = vector.broadcast %30 : vector<1x1xf32> to vector<8x1xf32>
    %32 = arith.addf %29, %31 : vector<8x1xf32>
    %c0_23 = arith.constant 0 : index
    %c0_24 = arith.constant 0 : index
    %33 = vector.load %arg10[%c0_23, %c0_24] : memref<8x1xf32, #tpu.memory_space<vmem>>, vector<8x1xf32>
    tpu.vector_store %arg10[%c0_23, %c0_24], %32 {strides = array<i32>} : memref<8x1xf32, #tpu.memory_space<vmem>>, vector<8x1xf32>,
    return
  }
  func.func @transform_0(%arg0: i32) -> (i32, i32) {
    %c0_i32 = arith.constant 0 : i32
    %c0_i32_0 = arith.constant 0 : i32
    return %arg0, %c0_i32 : i32, i32
  }
  func.func @transform_1(%arg0: i32) -> (i32, i32) {
    %c0_i32 = arith.constant 0 : i32
    %c0_i32_0 = arith.constant 0 : i32
    %c0_i32_1 = arith.constant 0 : i32
    return %c0_i32, %c0_i32_0 : i32, i32
  }
  func.func @transform_2(%arg0: i32) -> (i32, i32) {
    %c0_i32 = arith.constant 0 : i32
    %c0_i32_0 = arith.constant 0 : i32
    %c0_i32_1 = arith.constant 0 : i32
    return %c0_i32, %c0_i32_0 : i32, i32
  }
  func.func @transform_3(%arg0: i32) -> (i32, i32) {
    %c0_i32 = arith.constant 0 : i32
    %c0_i32_0 = arith.constant 0 : i32
    %c0_i32_1 = arith.constant 0 : i32
    return %c0_i32, %c0_i32_0 : i32, i32
  }
  func.func @transform_4(%arg0: i32) -> (i32, i32) {
    %c0_i32 = arith.constant 0 : i32
    %c0_i32_0 = arith.constant 0 : i32
    %c0_i32_1 = arith.constant 0 : i32
    return %c0_i32, %c0_i32_0 : i32, i32
  }
  func.func @transform_5(%arg0: i32) -> (i32, i32) {
    %c0_i32 = arith.constant 0 : i32
    %c0_i32_0 = arith.constant 0 : i32
    %c0_i32_1 = arith.constant 0 : i32
    return %c0_i32, %c0_i32_0 : i32, i32
  }
  func.func @transform_6(%arg0: i32) -> (i32, i32) {
    %c0_i32 = arith.constant 0 : i32
    %c0_i32_0 = arith.constant 0 : i32
    %c0_i32_1 = arith.constant 0 : i32
    return %c0_i32, %c0_i32_0 : i32, i32
  }
  func.func @transform_7(%arg0: i32) -> (i32, i32) {
    %c0_i32 = arith.constant 0 : i32
    %c0_i32_0 = arith.constant 0 : i32
    %c0_i32_1 = arith.constant 0 : i32
    return %c0_i32, %c0_i32_0 : i32, i32
  }
  func.func @transform_8(%arg0: i32) -> (i32, i32) {
    %c0_i32 = arith.constant 0 : i32
    %c0_i32_0 = arith.constant 0 : i32
    %c0_i32_1 = arith.constant 0 : i32
    return %c0_i32, %c0_i32_0 : i32, i32
  }
  func.func @transform_9(%arg0: i32) -> (i32, i32) {
    %c0_i32 = arith.constant 0 : i32
    %c0_i32_0 = arith.constant 0 : i32
    return %arg0, %c0_i32 : i32, i32
  }
}

</mosaic_0001>

<llo_original>
// kernel: tpu_custom_call.1
$region0: #{tpu_custom_call.1}
  #allocation0 [shape = 'u32[]', space=smem, size = 0x4, offset = 0x4, fixed_abs, tag = 'smem constant byte address 0x4 - core index']
  #allocation1 [shape = 'u32[144,128]{1,0:T(1,128)}', space=vmem, size = 0x12000, scoped, tag = 'internal scratch']
  #allocation2 [shape = 'f32[1,1]{1,0:T(1,128)S(1)}', space=vmem, size = 0x200, scoped, tag = 'scoped memory for tpu_custom_call.1']
  %s0 = inlined_call_operand.hbm [shape: f32[8,32], index: 0, kind: input, shape index: {}]
  %s1 = inlined_call_operand.hbm [shape: bf16[32,256], index: 1, kind: input, shape index: {}]
  %s2 = inlined_call_operand.vmem [shape: f32[1,256], index: 2, kind: input, shape index: {}]
  %s3 = inlined_call_operand.hbm [shape: bf16[256,256], index: 3, kind: input, shape index: {}]
  %s4 = inlined_call_operand.vmem [shape: f32[1,256], index: 4, kind: input, shape index: {}]
  %s5 = inlined_call_operand.hbm [shape: bf16[256,256], index: 5, kind: input, shape index: {}]
  %s6 = inlined_call_operand.vmem [shape: f32[1,256], index: 6, kind: input, shape index: {}]
  %s7 = inlined_call_operand.vmem [shape: f32[1,256], index: 7, kind: input, shape index: {}]
  %s8 = inlined_call_operand.<no memory space> [shape: f32[1,1], index: 8, kind: input, shape index: {}]
  %s9 = inlined_call_operand.vmem [shape: f32[8,1], index: 9, kind: output, shape index: {}]
  %s10 = sld [smem:[#allocation0]]
  $region62: #{tpu_custom_call.1} parent=0
    _
  %s12 = ssub.s32 1, %s10
  %s13 = scalar_select 0, %s12, %s10
  %v14 = vstv %s8
  %15 = vst [vmem:[#allocation2] sm:$0x1] %v14
  $region1: #{tpu_custom_call.1} parent=0
    #allocation3 [shape = 'u8[4096]{0}', space=vmem, size = 0x1000, scoped, tag = 'input window, operand 0, single buffered']
    #allocation4 [shape = 's32[1]{0}', space=sflag, size = 0x4, scoped, tag = 'scoped memory for tpu_custom_call.1']
    #allocation5 [shape = 'u8[16384]{0}', space=vmem, size = 0x4000, scoped, tag = 'input window, operand 1, single buffered']
    #allocation6 [shape = 's32[1]{0}', space=sflag, size = 0x4, scoped, tag = 'scoped memory for tpu_custom_call.1']
    #allocation7 [shape = 'u8[131072]{0}', space=vmem, size = 0x20000, scoped, tag = 'input window, operand 3, single buffered']
    #allocation8 [shape = 'u8[131072]{0}', space=vmem, size = 0x20000, scoped, tag = 'input window, operand 5, single buffered']
    #allocation9 [shape = 's32[1]{0}', space=sflag, size = 0x4, scoped, tag = 'scoped memory for tpu_custom_call.1']
    %16 = vsyncpa [#allocation4], 0
    %17 = vsyncpa [#allocation6], 0
    %18 = vsyncpa [#allocation9], 0
    // Predicated region
    $region2: #{tpu_custom_call.1} parent=1 // pred_check
      _
    $region3: #{tpu_custom_call.1} parent=1 // pred_check_branch
      %20 = sbr.rel (0) target = $region5
    $region4: #{tpu_custom_call.1} parent=1 // pred_region
      %s22 = ssub.s32 128, 128
      %23 = vsyncadd [#allocation4], %s22
      %s25 = sshll.u32 [#allocation3], 4
      %s26 = int_to_ptr.vmem [resolvable:$true] %s25
      %28 = dma.hbm_to_vmem [thread:$0]  %s0, 128, %s26, [#allocation4]
    $region5: #{tpu_custom_call.1} parent=1 // pred_fallthru
      _
    // Predicated region
    $region6: #{tpu_custom_call.1} parent=1 // pred_check
      _
    $region7: #{tpu_custom_call.1} parent=1 // pred_check_branch
      %30 = sbr.rel (0) target = $region9
    $region8: #{tpu_custom_call.1} parent=1 // pred_region
      %s32 = ssub.s32 512, 512
      %33 = vsyncadd [#allocation6], %s32
      %s34 = sshll.u32 [#allocation5], 4
      %s35 = int_to_ptr.vmem [resolvable:$true] %s34
      %40 = dma.hbm_to_vmem [thread:$0]  %s1, 512, %s35, [#allocation6], 128, 128, 8
    $region9: #{tpu_custom_call.1} parent=1 // pred_fallthru
      _
    // Predicated region
    $region10: #{tpu_custom_call.1} parent=1 // pred_check
      _
    $region11: #{tpu_custom_call.1} parent=1 // pred_check_branch
      %42 = sbr.rel (0) target = $region13
    $region12: #{tpu_custom_call.1} parent=1 // pred_region
      _
    $region13: #{tpu_custom_call.1} parent=1 // pred_fallthru
      _
    // Predicated region
    $region14: #{tpu_custom_call.1} parent=1 // pred_check
      _
    $region15: #{tpu_custom_call.1} parent=1 // pred_check_branch
      %44 = sbr.rel (0) target = $region17
    $region16: #{tpu_custom_call.1} parent=1 // pred_region
      %s46 = ssub.s32 4096, 4096
      %47 = vsyncadd [#allocation6], %s46
      %s48 = sshll.u32 [#allocation7], 4
      %s49 = int_to_ptr.vmem [resolvable:$true] %s48
      %54 = dma.hbm_to_vmem [thread:$0]  %s3, 4096, %s49, [#allocation6], 128, 128, 8
    $region17: #{tpu_custom_call.1} parent=1 // pred_fallthru
      _
    // Predicated region
    $region18: #{tpu_custom_call.1} parent=1 // pred_check
      _
    $region19: #{tpu_custom_call.1} parent=1 // pred_check_branch
      %56 = sbr.rel (0) target = $region21
    $region20: #{tpu_custom_call.1} parent=1 // pred_region
      _
    $region21: #{tpu_custom_call.1} parent=1 // pred_fallthru
      _
    // Predicated region
    $region22: #{tpu_custom_call.1} parent=1 // pred_check
      _
    $region23: #{tpu_custom_call.1} parent=1 // pred_check_branch
      %58 = sbr.rel (0) target = $region25
    $region24: #{tpu_custom_call.1} parent=1 // pred_region
      %s60 = ssub.s32 4096, 4096
      %61 = vsyncadd [#allocation9], %s60
      %s62 = sshll.u32 [#allocation8], 4
      %s63 = int_to_ptr.vmem [resolvable:$true] %s62
      %68 = dma.hbm_to_vmem [thread:$0]  %s5, 4096, %s63, [#allocation9], 128, 128, 8
    $region25: #{tpu_custom_call.1} parent=1 // pred_fallthru
      _
    // Predicated region
    $region26: #{tpu_custom_call.1} parent=1 // pred_check
      _
    $region27: #{tpu_custom_call.1} parent=1 // pred_check_branch
      %70 = sbr.rel (0) target = $region29
    $region28: #{tpu_custom_call.1} parent=1 // pred_region
      _
    $region29: #{tpu_custom_call.1} parent=1 // pred_fallthru
      _
    // Predicated region
    $region30: #{tpu_custom_call.1} parent=1 // pred_check
      _
    $region31: #{tpu_custom_call.1} parent=1 // pred_check_branch
      %72 = sbr.rel (0) target = $region33
    $region32: #{tpu_custom_call.1} parent=1 // pred_region
      _
    $region33: #{tpu_custom_call.1} parent=1 // pred_fallthru
      _
    // Predicated region
    $region34: #{tpu_custom_call.1} parent=1 // pred_check
      _
    $region35: #{tpu_custom_call.1} parent=1 // pred_check_branch
      %74 = sbr.rel (0) target = $region37
    $region36: #{tpu_custom_call.1} parent=1 // pred_region
      _
    $region37: #{tpu_custom_call.1} parent=1 // pred_fallthru
      _
    // Predicated region
    $region38: #{tpu_custom_call.1} parent=1 // pred_check
      _
    $region39: #{tpu_custom_call.1} parent=1 // pred_check_branch
      %76 = sbr.rel (0) target = $region41
    $region40: #{tpu_custom_call.1} parent=1 // pred_region
      %77 = dma.done [#allocation4], 128
    $region41: #{tpu_custom_call.1} parent=1 // pred_fallthru
      _
    // Predicated region
    $region42: #{tpu_custom_call.1} parent=1 // pred_check
      _
    $region43: #{tpu_custom_call.1} parent=1 // pred_check_branch
      %79 = sbr.rel (0) target = $region45
    $region44: #{tpu_custom_call.1} parent=1 // pred_region
      %80 = dma.done [#allocation6], 512
    $region45: #{tpu_custom_call.1} parent=1 // pred_fallthru
      _
    // Predicated region
    $region46: #{tpu_custom_call.1} parent=1 // pred_check
      _
    $region47: #{tpu_custom_call.1} parent=1 // pred_check_branch
      %82 = sbr.rel (0) target = $region49
    $region48: #{tpu_custom_call.1} parent=1 // pred_region
      %83 = dma.done [#allocation6], 4096
    $region49: #{tpu_custom_call.1} parent=1 // pred_fallthru
      _
    // Predicated region
    $region50: #{tpu_custom_call.1} parent=1 // pred_check
      _
    $region51: #{tpu_custom_call.1} parent=1 // pred_check_branch
      %85 = sbr.rel (0) target = $region53
    $region52: #{tpu_custom_call.1} parent=1 // pred_region
      %86 = dma.done [#allocation9], 4096
    $region53: #{tpu_custom_call.1} parent=1 // pred_fallthru
      _
    %v88 = vld [vmem:[#allocation3] sm:$0xff]
    %v89 = vpack.c.bf16 %v88, %v88
    %v90 = vld [vmem:[#allocation5] sm:$0xff]
    %v91 = vld [vmem:[#allocation5 + $0x8] sm:$0xff]
    %v92 = vld [vmem:[#allocation5 + $0x10] sm:$0xff]
    %v93 = vld [vmem:[#allocation5 + $0x18] sm:$0xff]
    %v94 = vld [vmem:[%s2] sm:$0x3]
    %v96 = vlaneseq
    %v97 = vshrl.u32 %v96, 7
    %v98 = vsub.s32 0, %v97
    %v99 = vrot.slane %v94, %v98
    %v100 = vlaneseq
    %v101 = vshrl.u32 %v100, 7
    %v102 = vsub.s32 1, %v101
    %v103 = vrot.slane %v94, %v102
    %v110 = vunpack.c.l.b16 %v90
    %v111 = vunpack.c.h.b16 %v90
    %v112 = vunpack.c.l.b16 %v91
    %v113 = vunpack.c.h.b16 %v91
    %v114 = vunpack.c.l.b16 %v92
    %v115 = vunpack.c.h.b16 %v92
    %v116 = vunpack.c.l.b16 %v93
    %v117 = vunpack.c.h.b16 %v93
    %v118 = vpack.c.b16 %v112, %v110
    %v119 = vpack.c.b16 %v113, %v111
    %v120 = vpack.c.b16 %v116, %v114
    %v121 = vpack.c.b16 %v117, %v115
    %vm126 = vcmask 261120
    %v128 = vsel %vm126, %v89, 0
    %130 = vmatprep.subr.bf16.mxu0 %v119
    %131 = vmatpush1.bf16.msra.mxu0 %v118
    %132 = vmatprep.subr.bf16.mxu0 %v121
    %133 = vmatpush1.bf16.msra.mxu0 %v120
    %134 = vmatprep.subr.bf16.mxu0 0
    %135 = vmatpush1.bf16.msra.mxu0 0
    %136 = vmatprep.subr.bf16.mxu0 0
    %137 = vmatpush1.bf16.msra.mxu0 0
    %138 = vmatprep.subr.bf16.mxu0 0
    %139 = vmatpush1.bf16.msra.mxu0 0
    %140 = vmatprep.subr.bf16.mxu0 0
    %141 = vmatpush1.bf16.msra.mxu0 0
    %142 = vmatprep.subr.bf16.mxu0 0
    %143 = vmatpush1.bf16.msra.mxu0 0
    %144 = vmatprep.subr.bf16.mxu0 0
    %145 = vmatpush1.bf16.msra.mxu0 0
    %146 = vmatprep.subr.bf16.mxu0 0
    %147 = vmatpush1.bf16.msra.mxu0 0
    %148 = vmatprep.subr.bf16.mxu0 0
    %149 = vmatpush1.bf16.msra.mxu0 0
    %150 = vmatprep.subr.bf16.mxu0 0
    %151 = vmatpush1.bf16.msra.mxu0 0
    %152 = vmatprep.subr.bf16.mxu0 0
    %153 = vmatpush1.bf16.msra.mxu0 0
    %154 = vmatprep.subr.bf16.mxu0 0
    %155 = vmatpush1.bf16.msra.mxu0 0
    %156 = vmatprep.subr.bf16.mxu0 0
    %157 = vmatpush1.bf16.msra.mxu0 0
    %158 = vmatprep.subr.bf16.mxu0 0
    %159 = vmatpush1.bf16.msra.mxu0 0
    %160 = vmatprep.subr.bf16.mxu0 0
    %161 = vmatpush1.bf16.msra.mxu0 0
    %162 = vmatprep.mubr.bf16.mxu0 0
    %163 = vmatmul.mubr.bf16.gmra.mrb[0].mxu0 %v128
    %v164 = vpop.f32.mrb[0].mxu0
    %v165 = vadd.f32 %v99, %v164
    %v166 = vpop.f32.mrb[0].mxu0
    %v167 = vadd.f32 %v103, %v166
    %v168 = vpop.f32.mrb[0].mxu0
    %v169 = vpop.f32.mrb[0].mxu0
    %170 = vdwg.mxu0
    %v171 = vmax.f32 %v165, 0.0
    %v172 = vmax.f32 %v167, 0.0
    %v173 = vpack.c.bf16 %v171, %v171
    %v174 = vpack.c.bf16 %v172, %v172
    %v175 = vld [vmem:[#allocation7] sm:$0xff]
    %v176 = vld [vmem:[#allocation7 + $0x8] sm:$0xff]
    %v177 = vld [vmem:[#allocation7 + $0x10] sm:$0xff]
    %v178 = vld [vmem:[#allocation7 + $0x18] sm:$0xff]
    %v179 = vld [vmem:[#allocation7 + $0x20] sm:$0xff]
    %v180 = vld [vmem:[#allocation7 + $0x28] sm:$0xff]
    %v181 = vld [vmem:[#allocation7 + $0x30] sm:$0xff]
    %v182 = vld [vmem:[#allocation7 + $0x38] sm:$0xff]
    %v183 = vld [vmem:[#allocation7 + $0x40] sm:$0xff]
    %v184 = vld [vmem:[#allocation7 + $0x48] sm:$0xff]
    %v185 = vld [vmem:[#allocation7 + $0x50] sm:$0xff]
    %v186 = vld [vmem:[#allocation7 + $0x58] sm:$0xff]
    %v187 = vld [vmem:[#allocation7 + $0x60] sm:$0xff]
    %v188 = vld [vmem:[#allocation7 + $0x68] sm:$0xff]
    %v189 = vld [vmem:[#allocation7 + $0x70] sm:$0xff]
    %v190 = vld [vmem:[#allocation7 + $0x78] sm:$0xff]
    %v191 = vld [vmem:[#allocation7 + $0x80] sm:$0xff]
    %v192 = vld [vmem:[#allocation7 + $0x88] sm:$0xff]
    %v193 = vld [vmem:[#allocation7 + $0x90] sm:$0xff]
    %v194 = vld [vmem:[#allocation7 + $0x98] sm:$0xff]
    %v195 = vld [vmem:[#allocation7 + $0xa0] sm:$0xff]
    %v196 = vld [vmem:[#allocation7 + $0xa8] sm:$0xff]
    %v197 = vld [vmem:[#allocation7 + $0xb0] sm:$0xff]
    %v198 = vld [vmem:[#allocation7 + $0xb8] sm:$0xff]
    %v199 = vld [vmem:[#allocation7 + $0xc0] sm:$0xff]
    %v200 = vld [vmem:[#allocation7 + $0xc8] sm:$0xff]
    %v201 = vld [vmem:[#allocation7 + $0xd0] sm:$0xff]
    %v202 = vld [vmem:[#allocation7 + $0xd8] sm:$0xff]
    %v203 = vld [vmem:[#allocation7 + $0xe0] sm:$0xff]
    %v204 = vld [vmem:[#allocation7 + $0xe8] sm:$0xff]
    %v205 = vld [vmem:[#allocation7 + $0xf0] sm:$0xff]
    %v206 = vld [vmem:[#allocation7 + $0xf8] sm:$0xff]
    %v207 = vld [vmem:[%s4] sm:$0x3]
    %v209 = vlaneseq
    %v210 = vshrl.u32 %v209, 7
    %v211 = vsub.s32 0, %v210
    %v212 = vrot.slane %v207, %v211
    %v213 = vlaneseq
    %v214 = vshrl.u32 %v213, 7
    %v215 = vsub.s32 1, %v214
    %v216 = vrot.slane %v207, %v215
    %v251 = vunpack.c.l.b16 %v175
    %v252 = vunpack.c.h.b16 %v175
    %v253 = vunpack.c.l.b16 %v176
    %v254 = vunpack.c.h.b16 %v176
    %v255 = vunpack.c.l.b16 %v177
    %v256 = vunpack.c.h.b16 %v177
    %v257 = vunpack.c.l.b16 %v178
    %v258 = vunpack.c.h.b16 %v178
    %v259 = vunpack.c.l.b16 %v179
    %v260 = vunpack.c.h.b16 %v179
    %v261 = vunpack.c.l.b16 %v180
    %v262 = vunpack.c.h.b16 %v180
    %v263 = vunpack.c.l.b16 %v181
    %v264 = vunpack.c.h.b16 %v181
    %v265 = vunpack.c.l.b16 %v182
    %v266 = vunpack.c.h.b16 %v182
    %v267 = vunpack.c.l.b16 %v183
    %v268 = vunpack.c.h.b16 %v183
    %v269 = vunpack.c.l.b16 %v184
    %v270 = vunpack.c.h.b16 %v184
    %v271 = vunpack.c.l.b16 %v185
    %v272 = vunpack.c.h.b16 %v185
    %v273 = vunpack.c.l.b16 %v186
    %v274 = vunpack.c.h.b16 %v186
    %v275 = vunpack.c.l.b16 %v187
    %v276 = vunpack.c.h.b16 %v187
    %v277 = vunpack.c.l.b16 %v188
    %v278 = vunpack.c.h.b16 %v188
    %v279 = vunpack.c.l.b16 %v189
    %v280 = vunpack.c.h.b16 %v189
    %v281 = vunpack.c.l.b16 %v190
    %v282 = vunpack.c.h.b16 %v190
    %v283 = vunpack.c.l.b16 %v191
    %v284 = vunpack.c.h.b16 %v191
    %v285 = vunpack.c.l.b16 %v192
    %v286 = vunpack.c.h.b16 %v192
    %v287 = vunpack.c.l.b16 %v193
    %v288 = vunpack.c.h.b16 %v193
    %v289 = vunpack.c.l.b16 %v194
    %v290 = vunpack.c.h.b16 %v194
    %v291 = vunpack.c.l.b16 %v195
    %v292 = vunpack.c.h.b16 %v195
    %v293 = vunpack.c.l.b16 %v196
    %v294 = vunpack.c.h.b16 %v196
    %v295 = vunpack.c.l.b16 %v197
    %v296 = vunpack.c.h.b16 %v197
    %v297 = vunpack.c.l.b16 %v198
    %v298 = vunpack.c.h.b16 %v198
    %v299 = vunpack.c.l.b16 %v199
    %v300 = vunpack.c.h.b16 %v199
    %v301 = vunpack.c.l.b16 %v200
    %v302 = vunpack.c.h.b16 %v200
    %v303 = vunpack.c.l.b16 %v201
    %v304 = vunpack.c.h.b16 %v201
    %v305 = vunpack.c.l.b16 %v202
    %v306 = vunpack.c.h.b16 %v202
    %v307 = vunpack.c.l.b16 %v203
    %v308 = vunpack.c.h.b16 %v203
    %v309 = vunpack.c.l.b16 %v204
    %v310 = vunpack.c.h.b16 %v204
    %v311 = vunpack.c.l.b16 %v205
    %v312 = vunpack.c.h.b16 %v205
    %v313 = vunpack.c.l.b16 %v206
    %v314 = vunpack.c.h.b16 %v206
    %v315 = vpack.c.b16 %v253, %v251
    %v316 = vpack.c.b16 %v254, %v252
    %v317 = vpack.c.b16 %v257, %v255
    %v318 = vpack.c.b16 %v258, %v256
    %v319 = vpack.c.b16 %v261, %v259
    %v320 = vpack.c.b16 %v262, %v260
    %v321 = vpack.c.b16 %v265, %v263
    %v322 = vpack.c.b16 %v266, %v264
    %v323 = vpack.c.b16 %v269, %v267
    %v324 = vpack.c.b16 %v270, %v268
    %v325 = vpack.c.b16 %v273, %v271
    %v326 = vpack.c.b16 %v274, %v272
    %v327 = vpack.c.b16 %v277, %v275
    %v328 = vpack.c.b16 %v278, %v276
    %v329 = vpack.c.b16 %v281, %v279
    %v330 = vpack.c.b16 %v282, %v280
    %v331 = vpack.c.b16 %v285, %v283
    %v332 = vpack.c.b16 %v286, %v284
    %v333 = vpack.c.b16 %v289, %v287
    %v334 = vpack.c.b16 %v290, %v288
    %v335 = vpack.c.b16 %v293, %v291
    %v336 = vpack.c.b16 %v294, %v292
    %v337 = vpack.c.b16 %v297, %v295
    %v338 = vpack.c.b16 %v298, %v296
    %v339 = vpack.c.b16 %v301, %v299
    %v340 = vpack.c.b16 %v302, %v300
    %v341 = vpack.c.b16 %v305, %v303
    %v342 = vpack.c.b16 %v306, %v304
    %v343 = vpack.c.b16 %v309, %v307
    %v344 = vpack.c.b16 %v310, %v308
    %v345 = vpack.c.b16 %v313, %v311
    %v346 = vpack.c.b16 %v314, %v312
    %379 = vmatprep.subr.bf16.mxu0 %v316
    %380 = vmatpush1.bf16.msra.mxu0 %v315
    %381 = vmatprep.subr.bf16.mxu0 %v318
    %382 = vmatpush1.bf16.msra.mxu0 %v317
    %383 = vmatprep.subr.bf16.mxu0 %v320
    %384 = vmatpush1.bf16.msra.mxu0 %v319
    %385 = vmatprep.subr.bf16.mxu0 %v322
    %386 = vmatpush1.bf16.msra.mxu0 %v321
    %387 = vmatprep.subr.bf16.mxu0 %v324
    %388 = vmatpush1.bf16.msra.mxu0 %v323
    %389 = vmatprep.subr.bf16.mxu0 %v326
    %390 = vmatpush1.bf16.msra.mxu0 %v325
    %391 = vmatprep.subr.bf16.mxu0 %v328
    %392 = vmatpush1.bf16.msra.mxu0 %v327
    %393 = vmatprep.subr.bf16.mxu0 %v330
    %394 = vmatpush1.bf16.msra.mxu0 %v329
    %395 = vmatprep.subr.bf16.mxu0 %v332
    %396 = vmatpush1.bf16.msra.mxu0 %v331
    %397 = vmatprep.subr.bf16.mxu0 %v334
    %398 = vmatpush1.bf16.msra.mxu0 %v333
    %399 = vmatprep.subr.bf16.mxu0 %v336
    %400 = vmatpush1.bf16.msra.mxu0 %v335
    %401 = vmatprep.subr.bf16.mxu0 %v338
    %402 = vmatpush1.bf16.msra.mxu0 %v337
    %403 = vmatprep.subr.bf16.mxu0 %v340
    %404 = vmatpush1.bf16.msra.mxu0 %v339
    %405 = vmatprep.subr.bf16.mxu0 %v342
    %406 = vmatpush1.bf16.msra.mxu0 %v341
    %407 = vmatprep.subr.bf16.mxu0 %v344
    %408 = vmatpush1.bf16.msra.mxu0 %v343
    %409 = vmatprep.subr.bf16.mxu0 %v346
    %410 = vmatpush1.bf16.msra.mxu0 %v345
    %411 = vmatprep.mubr.bf16.mxu0 %v174
    %412 = vmatmul.mubr.bf16.gmra.mrb[0].mxu0 %v173
    %v413 = vpop.f32.mrb[0].mxu0
    %v414 = vadd.f32 %v212, %v413
    %v415 = vpop.f32.mrb[0].mxu0
    %v416 = vadd.f32 %v216, %v415
    %v417 = vpop.f32.mrb[0].mxu0
    %v418 = vpop.f32.mrb[0].mxu0
    %419 = vdwg.mxu0
    %v420 = vmax.f32 %v414, 0.0
    %v421 = vmax.f32 %v416, 0.0
    %v422 = vpack.c.bf16 %v420, %v420
    %v423 = vpack.c.bf16 %v421, %v421
    %v424 = vld [vmem:[#allocation8] sm:$0xff]
    %v425 = vld [vmem:[#allocation8 + $0x8] sm:$0xff]
    %v426 = vld [vmem:[#allocation8 + $0x10] sm:$0xff]
    %v427 = vld [vmem:[#allocation8 + $0x18] sm:$0xff]
    %v428 = vld [vmem:[#allocation8 + $0x20] sm:$0xff]
    %v429 = vld [vmem:[#allocation8 + $0x28] sm:$0xff]
    %v430 = vld [vmem:[#allocation8 + $0x30] sm:$0xff]
    %v431 = vld [vmem:[#allocation8 + $0x38] sm:$0xff]
    %v432 = vld [vmem:[#allocation8 + $0x40] sm:$0xff]
    %v433 = vld [vmem:[#allocation8 + $0x48] sm:$0xff]
    %v434 = vld [vmem:[#allocation8 + $0x50] sm:$0xff]
    %v435 = vld [vmem:[#allocation8 + $0x58] sm:$0xff]
    %v436 = vld [vmem:[#allocation8 + $0x60] sm:$0xff]
    %v437 = vld [vmem:[#allocation8 + $0x68] sm:$0xff]
    %v438 = vld [vmem:[#allocation8 + $0x70] sm:$0xff]
    %v439 = vld [vmem:[#allocation8 + $0x78] sm:$0xff]
    %v440 = vld [vmem:[#allocation8 + $0x80] sm:$0xff]
    %v441 = vld [vmem:[#allocation8 + $0x88] sm:$0xff]
    %v442 = vld [vmem:[#allocation8 + $0x90] sm:$0xff]
    %v443 = vld [vmem:[#allocation8 + $0x98] sm:$0xff]
    %v444 = vld [vmem:[#allocation8 + $0xa0] sm:$0xff]
    %v445 = vld [vmem:[#allocation8 + $0xa8] sm:$0xff]
    %v446 = vld [vmem:[#allocation8 + $0xb0] sm:$0xff]
    %v447 = vld [vmem:[#allocation8 + $0xb8] sm:$0xff]
    %v448 = vld [vmem:[#allocation8 + $0xc0] sm:$0xff]
    %v449 = vld [vmem:[#allocation8 + $0xc8] sm:$0xff]
    %v450 = vld [vmem:[#allocation8 + $0xd0] sm:$0xff]
    %v451 = vld [vmem:[#allocation8 + $0xd8] sm:$0xff]
    %v452 = vld [vmem:[#allocation8 + $0xe0] sm:$0xff]
    %v453 = vld [vmem:[#allocation8 + $0xe8] sm:$0xff]
    %v454 = vld [vmem:[#allocation8 + $0xf0] sm:$0xff]
    %v455 = vld [vmem:[#allocation8 + $0xf8] sm:$0xff]
    %v456 = vld [vmem:[%s6] sm:$0x3]
    %v458 = vlaneseq
    %v459 = vshrl.u32 %v458, 7
    %v460 = vsub.s32 0, %v459
    %v461 = vrot.slane %v456, %v460
    %v462 = vlaneseq
    %v463 = vshrl.u32 %v462, 7
    %v464 = vsub.s32 1, %v463
    %v465 = vrot.slane %v456, %v464
    %v500 = vunpack.c.l.b16 %v424
    %v501 = vunpack.c.h.b16 %v424
    %v502 = vunpack.c.l.b16 %v425
    %v503 = vunpack.c.h.b16 %v425
    %v504 = vunpack.c.l.b16 %v426
    %v505 = vunpack.c.h.b16 %v426
    %v506 = vunpack.c.l.b16 %v427
    %v507 = vunpack.c.h.b16 %v427
    %v508 = vunpack.c.l.b16 %v428
    %v509 = vunpack.c.h.b16 %v428
    %v510 = vunpack.c.l.b16 %v429
    %v511 = vunpack.c.h.b16 %v429
    %v512 = vunpack.c.l.b16 %v430
    %v513 = vunpack.c.h.b16 %v430
    %v514 = vunpack.c.l.b16 %v431
    %v515 = vunpack.c.h.b16 %v431
    %v516 = vunpack.c.l.b16 %v432
    %v517 = vunpack.c.h.b16 %v432
    %v518 = vunpack.c.l.b16 %v433
    %v519 = vunpack.c.h.b16 %v433
    %v520 = vunpack.c.l.b16 %v434
    %v521 = vunpack.c.h.b16 %v434
    %v522 = vunpack.c.l.b16 %v435
    %v523 = vunpack.c.h.b16 %v435
    %v524 = vunpack.c.l.b16 %v436
    %v525 = vunpack.c.h.b16 %v436
    %v526 = vunpack.c.l.b16 %v437
    %v527 = vunpack.c.h.b16 %v437
    %v528 = vunpack.c.l.b16 %v438
    %v529 = vunpack.c.h.b16 %v438
    %v530 = vunpack.c.l.b16 %v439
    %v531 = vunpack.c.h.b16 %v439
    %v532 = vunpack.c.l.b16 %v440
    %v533 = vunpack.c.h.b16 %v440
    %v534 = vunpack.c.l.b16 %v441
    %v535 = vunpack.c.h.b16 %v441
    %v536 = vunpack.c.l.b16 %v442
    %v537 = vunpack.c.h.b16 %v442
    %v538 = vunpack.c.l.b16 %v443
    %v539 = vunpack.c.h.b16 %v443
    %v540 = vunpack.c.l.b16 %v444
    %v541 = vunpack.c.h.b16 %v444
    %v542 = vunpack.c.l.b16 %v445
    %v543 = vunpack.c.h.b16 %v445
    %v544 = vunpack.c.l.b16 %v446
    %v545 = vunpack.c.h.b16 %v446
    %v546 = vunpack.c.l.b16 %v447
    %v547 = vunpack.c.h.b16 %v447
    %v548 = vunpack.c.l.b16 %v448
    %v549 = vunpack.c.h.b16 %v448
    %v550 = vunpack.c.l.b16 %v449
    %v551 = vunpack.c.h.b16 %v449
    %v552 = vunpack.c.l.b16 %v450
    %v553 = vunpack.c.h.b16 %v450
    %v554 = vunpack.c.l.b16 %v451
    %v555 = vunpack.c.h.b16 %v451
    %v556 = vunpack.c.l.b16 %v452
    %v557 = vunpack.c.h.b16 %v452
    %v558 = vunpack.c.l.b16 %v453
    %v559 = vunpack.c.h.b16 %v453
    %v560 = vunpack.c.l.b16 %v454
    %v561 = vunpack.c.h.b16 %v454
    %v562 = vunpack.c.l.b16 %v455
    %v563 = vunpack.c.h.b16 %v455
    %v564 = vpack.c.b16 %v502, %v500
    %v565 = vpack.c.b16 %v503, %v501
    %v566 = vpack.c.b16 %v506, %v504
    %v567 = vpack.c.b16 %v507, %v505
    %v568 = vpack.c.b16 %v510, %v508
    %v569 = vpack.c.b16 %v511, %v509
    %v570 = vpack.c.b16 %v514, %v512
    %v571 = vpack.c.b16 %v515, %v513
    %v572 = vpack.c.b16 %v518, %v516
    %v573 = vpack.c.b16 %v519, %v517
    %v574 = vpack.c.b16 %v522, %v520
    %v575 = vpack.c.b16 %v523, %v521
    %v576 = vpack.c.b16 %v526, %v524
    %v577 = vpack.c.b16 %v527, %v525
    %v578 = vpack.c.b16 %v530, %v528
    %v579 = vpack.c.b16 %v531, %v529
    %v580 = vpack.c.b16 %v534, %v532
    %v581 = vpack.c.b16 %v535, %v533
    %v582 = vpack.c.b16 %v538, %v536
    %v583 = vpack.c.b16 %v539, %v537
    %v584 = vpack.c.b16 %v542, %v540
    %v585 = vpack.c.b16 %v543, %v541
    %v586 = vpack.c.b16 %v546, %v544
    %v587 = vpack.c.b16 %v547, %v545
    %v588 = vpack.c.b16 %v550, %v548
    %v589 = vpack.c.b16 %v551, %v549
    %v590 = vpack.c.b16 %v554, %v552
    %v591 = vpack.c.b16 %v555, %v553
    %v592 = vpack.c.b16 %v558, %v556
    %v593 = vpack.c.b16 %v559, %v557
    %v594 = vpack.c.b16 %v562, %v560
    %v595 = vpack.c.b16 %v563, %v561
    %628 = vmatprep.subr.bf16.mxu0 %v565
    %629 = vmatpush1.bf16.msra.mxu0 %v564
    %630 = vmatprep.subr.bf16.mxu0 %v567
    %631 = vmatpush1.bf16.msra.mxu0 %v566
    %632 = vmatprep.subr.bf16.mxu0 %v569
    %633 = vmatpush1.bf16.msra.mxu0 %v568
    %634 = vmatprep.subr.bf16.mxu0 %v571
    %635 = vmatpush1.bf16.msra.mxu0 %v570
    %636 = vmatprep.subr.bf16.mxu0 %v573
    %637 = vmatpush1.bf16.msra.mxu0 %v572
    %638 = vmatprep.subr.bf16.mxu0 %v575
    %639 = vmatpush1.bf16.msra.mxu0 %v574
    %640 = vmatprep.subr.bf16.mxu0 %v577
    %641 = vmatpush1.bf16.msra.mxu0 %v576
    %642 = vmatprep.subr.bf16.mxu0 %v579
    %643 = vmatpush1.bf16.msra.mxu0 %v578
    %644 = vmatprep.subr.bf16.mxu0 %v581
    %645 = vmatpush1.bf16.msra.mxu0 %v580
    %646 = vmatprep.subr.bf16.mxu0 %v583
    %647 = vmatpush1.bf16.msra.mxu0 %v582
    %648 = vmatprep.subr.bf16.mxu0 %v585
    %649 = vmatpush1.bf16.msra.mxu0 %v584
    %650 = vmatprep.subr.bf16.mxu0 %v587
    %651 = vmatpush1.bf16.msra.mxu0 %v586
    %652 = vmatprep.subr.bf16.mxu0 %v589
    %653 = vmatpush1.bf16.msra.mxu0 %v588
    %654 = vmatprep.subr.bf16.mxu0 %v591
    %655 = vmatpush1.bf16.msra.mxu0 %v590
    %656 = vmatprep.subr.bf16.mxu0 %v593
    %657 = vmatpush1.bf16.msra.mxu0 %v592
    %658 = vmatprep.subr.bf16.mxu0 %v595
    %659 = vmatpush1.bf16.msra.mxu0 %v594
    %660 = vmatprep.mubr.bf16.mxu0 %v423
    %661 = vmatmul.mubr.bf16.gmra.mrb[0].mxu0 %v422
    %v662 = vpop.f32.mrb[0].mxu0
    %v663 = vadd.f32 %v461, %v662
    %v664 = vpop.f32.mrb[0].mxu0
    %v665 = vadd.f32 %v465, %v664
    %v666 = vpop.f32.mrb[0].mxu0
    %v667 = vpop.f32.mrb[0].mxu0
    %668 = vdwg.mxu0
    %v669 = vmax.f32 %v663, 0.0
    %v670 = vmax.f32 %v665, 0.0
    %v671 = vld [vmem:[%s7] sm:$0x3]
    %v673 = vlaneseq
    %v674 = vshrl.u32 %v673, 7
    %v675 = vsub.s32 0, %v674
    %v676 = vrot.slane %v671, %v675
    %v677 = vlaneseq
    %v678 = vshrl.u32 %v677, 7
    %v679 = vsub.s32 1, %v678
    %v680 = vrot.slane %v671, %v679
    %v683 = vmul.f32 %v669, %v676
    %v684 = vmul.f32 %v670, %v680
    %v685 = vadd.f32 %v683, %v684
    %686 = vadd.xlane.f32.xlu0 %v685
    %v687 = vpop.xlane.xlu0 %686
    %v688 = vld [vmem:[#allocation2] sm:$0x1]
    %v690 = vlaneseq
    %v691 = vshrl.u32 %v690, 7
    %v692 = vsub.s32 0, %v691
    %v693 = vrot.slane %v688, %v692
    %v695 = vadd.f32 %v687, %v693
    %vm696 = vcmask 7168
    %697 = vst.msk [vmem:[%s9] sm:$0xff] %vm696, %v695
    // Predicated region
    $region54: #{tpu_custom_call.1} parent=1 // pred_check
      _
    $region55: #{tpu_custom_call.1} parent=1 // pred_check_branch
      %699 = sbr.rel (0) target = $region57
    $region56: #{tpu_custom_call.1} parent=1 // pred_region
      _
    $region57: #{tpu_custom_call.1} parent=1 // pred_fallthru
      _
    // Predicated region
    $region58: #{tpu_custom_call.1} parent=1 // pred_check
      _
    $region59: #{tpu_custom_call.1} parent=1 // pred_check_branch
      %701 = sbr.rel (0) target = $region61
    $region60: #{tpu_custom_call.1} parent=1 // pred_region
      _
    $region61: #{tpu_custom_call.1} parent=1 // pred_fallthru
      _
    %702 = vsyncpa [#allocation4], 1
    %703 = vsyncpa [#allocation6], 1
    %704 = vsyncpa [#allocation9], 1

</llo_original>
